<compile_context>
chip_gen: v5e
topology: v5e:2x2
jax: 0.10.0
libtpu: 0.0.40
codegen_flags: <defaults>
</compile_context>

<pallas_src>
import jax
import jax.numpy as jnp
from jax.experimental import pallas as pl
from jax.experimental.pallas import tpu as pltpu

_LANES = 128
_SUBLANES = 8
_TILE_ELEMS = _SUBLANES * _LANES  # 1024


def _cdiv(a, b):
    return -(-a // b)


def _round_up(a, m):
    return _cdiv(a, m) * m


def _device_kind():
    try:
        return jax.devices()[0].device_kind.lower()
    except Exception:
        return ""


def _make_mse_kernel(*, tm, sub, num_steps, rows_valid, needs_mask):
    """Streaming sum-of-squared-differences kernel.

    a_ref/b_ref: (tm, 128) input tiles.
    o_ref: (8, 128) f32 partial-sum block, VMEM-resident across the reduction axis.
    """
    n_sub = tm // sub

    def kernel(a_ref, b_ref, o_ref):
        s = pl.program_id(1)

        @pl.when(s == 0)
        def _():
            o_ref[...] = jnp.zeros_like(o_ref)

        # Logical (unclamped) first row of this block; used only for tail masking.
        row0 = (pl.program_id(0) * num_steps + s) * tm

        def partial_sum(a, b, row_base):
            d = a.astype(jnp.float32) - b.astype(jnp.float32)
            sq = d * d
            if needs_mask:
                r = row_base + jax.lax.broadcasted_iota(jnp.int32, sq.shape, 0)
                sq = jnp.where(r < rows_valid, sq, jnp.float32(0.0))
            # Per-(sublane, lane) partial sums: pure vreg adds, no cross-lane work.
            return jnp.sum(sq.reshape(sub // _SUBLANES, _SUBLANES, _LANES), axis=0)

        if n_sub == 1:
            o_ref[...] += partial_sum(a_ref[...], b_ref[...], row0)
        else:
            # Sub-chunk loop bounds compute live ranges (large tm is for DMA
            # amortization only; keep the in-core working set within the vreg file).
            def body(c, acc):
                start = pl.multiple_of(c * sub, sub)
                return acc + partial_sum(a_ref[pl.ds(start, sub), :],
                                         b_ref[pl.ds(start, sub), :],
                                         row0 + c * sub)

            acc = jax.lax.fori_loop(0, n_sub, body,
                                    jnp.zeros((_SUBLANES, _LANES), jnp.float32))
            o_ref[...] += acc

    return kernel


def mse_loss_pallas(model_output, text_embedding):
    assert model_output.shape == text_embedding.shape, "mse_loss expects matching shapes"
    n_total = int(model_output.size)

    a = jnp.ravel(model_output)
    b = jnp.ravel(text_embedding)

    # Peel the tail that does not fill a whole (8, 128) tile; computed with plain jnp
    # (< 1024 elements) so the kernel operands never need a jnp.pad copy.
    main = (n_total // _TILE_ELEMS) * _TILE_ELEMS
    tail_sum = jnp.float32(0.0)
    if main < n_total:
        dt = a[main:].astype(jnp.float32) - b[main:].astype(jnp.float32)
        tail_sum = jnp.sum(dt * dt)
    if main == 0:
        # TODO(synk): sub-1024-element inputs are pure dispatch overhead; plain XLA.
        return tail_sum / jnp.float32(n_total)

    rows = main // _LANES            # multiple of 8
    a2 = a[:main].reshape(rows, _LANES)
    b2 = b[:main].reshape(rows, _LANES)

    kind = _device_kind()
    is_v7 = "v7" in kind
    multi_tc = is_v7 or ("v4" in kind) or ("v5p" in kind)   # chips with 2 TCs/device
    tm_target = 8192 if is_v7 else 4096                     # v5e/v6e cap (16/32 MiB scoped VMEM)

    if rows <= 256:
        tm = rows                    # single full-array block (<=128 KiB/operand)
    else:
        tm = min(tm_target, _round_up(_cdiv(rows, 4), 256))  # >=4 pipeline steps
    sub = min(256, tm)               # compute sub-chunk; always divides tm

    total_blocks = _cdiv(rows, tm)
    num_parallel = 2 if (multi_tc and total_blocks >= 2) else 1
    num_steps = _cdiv(total_blocks, num_parallel)
    needs_mask = (num_parallel * num_steps * tm) != rows

    kernel = _make_mse_kernel(tm=tm, sub=sub, num_steps=num_steps,
                              rows_valid=rows, needs_mask=needs_mask)

    # Clamp the block index so grid points past the last block re-read a valid block
    # (their contribution is zeroed by the mask).
    def in_map(p, s):
        return (jnp.minimum(p * num_steps + s, total_blocks - 1), 0)

    bytes_in = (a2.dtype.itemsize + b2.dtype.itemsize) * main
    out_bytes = num_parallel * _SUBLANES * _LANES * 4
    partial = pl.pallas_call(
        kernel,
        out_shape=jax.ShapeDtypeStruct((num_parallel * _SUBLANES, _LANES), jnp.float32),
        grid_spec=pltpu.PrefetchScalarGridSpec(
            num_scalar_prefetch=0,
            grid=(num_parallel, num_steps),
            in_specs=[
                pl.BlockSpec((tm, _LANES), in_map),
                pl.BlockSpec((tm, _LANES), in_map),
            ],
            out_specs=pl.BlockSpec((_SUBLANES, _LANES), lambda p, s: (p, 0)),
        ),
        compiler_params=pltpu.CompilerParams(
            dimension_semantics=("parallel", "arbitrary"),
        ),
        cost_estimate=pl.CostEstimate(flops=3 * main, transcendentals=0,
                                      bytes_accessed=bytes_in + out_bytes),
    )(a2, b2)

    # Single final cross-lane/sublane reduce + mean normalization, outside the kernel.
    return (jnp.sum(partial) + tail_sum) / jnp.float32(n_total)


if __name__ == "__main__":
    key = jax.random.PRNGKey(0)
    k1, k2, k3, k4 = jax.random.split(key, 4)

    # Small shapes consistent with the module's (model_output, text_embedding) signature:
    # batch=2, channels=4, spatial=16x16.
    model_output = jax.random.normal(k1, (2, 4, 16, 16), dtype=jnp.float32)
    text_embedding = jax.random.normal(k2, (2, 4, 16, 16), dtype=jnp.float32)

    loss = mse_loss_pallas(model_output, text_embedding)
    jax.block_until_ready(loss)
    ref = jnp.mean((model_output - text_embedding) ** 2)
    assert jnp.allclose(loss, ref, rtol=1e-5, atol=1e-6), (loss, ref)

    # Also exercise the tiled / pipelined path (multi-step accumulation + sub-chunk loop).
    big_a = jax.random.normal(k3, (16, 16, 32, 32), dtype=jnp.float32)
    big_b = jax.random.normal(k4, (16, 16, 32, 32), dtype=jnp.float32)
    loss_big = mse_loss_pallas(big_a, big_b)
    jax.block_until_ready(loss_big)
    ref_big = jnp.mean((big_a - big_b) ** 2)
    assert jnp.allclose(loss_big, ref_big, rtol=1e-5, atol=1e-6), (loss_big, ref_big)

    print("KERNEL_OK")
</pallas_src>

<mosaic_0001>
module attributes {stable_mosaic.version = 11 : i64} {
  func.func @kernel(%arg0: i32, %arg1: i32, %arg2: memref<16x128xf32, #tpu.memory_space<vmem>>, %arg3: memref<16x128xf32, #tpu.memory_space<vmem>>, %arg4: memref<8x128xf32, #tpu.memory_space<vmem>>) attributes {dimension_semantics = [#tpu.dimension_semantics<parallel>, #tpu.dimension_semantics<arbitrary>], iteration_bounds = array<i64: 1, 1>, scalar_prefetch = 0 : i64, scratch_operands = 0 : i64, tpu.core_type = #tpu.core_type<tc>, window_params = [{transform_indices = @transform_0, window_bounds = array<i64: 16, 128>}, {transform_indices = @transform_1, window_bounds = array<i64: 16, 128>}, {transform_indices = @transform_2, window_bounds = array<i64: 8, 128>}]} {
    %c0_i32 = arith.constant 0 : i32
    %0 = arith.cmpi eq, %arg1, %c0_i32 : i32
    %1 = arith.extui %0 : i1 to i32
    %c0_i32_0 = arith.constant 0 : i32
    %2 = arith.cmpi ne, %1, %c0_i32_0 : i32
    scf.if %2 {
      %cst_8 = arith.constant 0.000000e+00 : f32
      %12 = vector.broadcast %cst_8 : f32 to vector<8x128xf32>
      %c0_9 = arith.constant 0 : index
      %c0_10 = arith.constant 0 : index
      %13 = vector.load %arg4[%c0_9, %c0_10] : memref<8x128xf32, #tpu.memory_space<vmem>>, vector<8x128xf32>
      tpu.vector_store %arg4[%c0_9, %c0_10], %12 {strides = array<i32>} : memref<8x128xf32, #tpu.memory_space<vmem>>, vector<8x128xf32>,
    } else {
    }
    %c0 = arith.constant 0 : index
    %c0_1 = arith.constant 0 : index
    %3 = vector.load %arg4[%c0, %c0_1] : memref<8x128xf32, #tpu.memory_space<vmem>>, vector<8x128xf32>
    %c0_2 = arith.constant 0 : index
    %c0_3 = arith.constant 0 : index
    %4 = vector.load %arg2[%c0_2, %c0_3] : memref<16x128xf32, #tpu.memory_space<vmem>>, vector<16x128xf32>
    %c0_4 = arith.constant 0 : index
    %c0_5 = arith.constant 0 : index
    %5 = vector.load %arg3[%c0_4, %c0_5] : memref<16x128xf32, #tpu.memory_space<vmem>>, vector<16x128xf32>
    %6 = arith.subf %4, %5 : vector<16x128xf32>
    %7 = arith.mulf %6, %6 : vector<16x128xf32>
    %8 = vector.shape_cast %7 : vector<16x128xf32> to vector<2x8x128xf32>
    %cst = arith.constant dense<0.000000e+00> : vector<8x128xf32>
    %9 = vector.multi_reduction <add>, %8, %cst [0] : vector<2x8x128xf32> to vector<8x128xf32>
    %10 = arith.addf %3, %9 : vector<8x128xf32>
    %c0_6 = arith.constant 0 : index
    %c0_7 = arith.constant 0 : index
    %11 = vector.load %arg4[%c0_6, %c0_7] : memref<8x128xf32, #tpu.memory_space<vmem>>, vector<8x128xf32>
    tpu.vector_store %arg4[%c0_6, %c0_7], %10 {strides = array<i32>} : memref<8x128xf32, #tpu.memory_space<vmem>>, vector<8x128xf32>,
    return
  }
  func.func @transform_0(%arg0: i32, %arg1: i32) -> (i32, i32) {
    %c1_i32 = arith.constant 1 : i32
    %0 = arith.muli %arg0, %c1_i32 : i32
    %1 = arith.addi %0, %arg1 : i32
    %c0_i32 = arith.constant 0 : i32
    %2 = arith.minsi %1, %c0_i32 : i32
    %c0_i32_0 = arith.constant 0 : i32
    %c0_i32_1 = arith.constant 0 : i32
    return %2, %c0_i32_0 : i32, i32
  }
  func.func @transform_1(%arg0: i32, %arg1: i32) -> (i32, i32) {
    %c1_i32 = arith.constant 1 : i32
    %0 = arith.muli %arg0, %c1_i32 : i32
    %1 = arith.addi %0, %arg1 : i32
    %c0_i32 = arith.constant 0 : i32
    %2 = arith.minsi %1, %c0_i32 : i32
    %c0_i32_0 = arith.constant 0 : i32
    %c0_i32_1 = arith.constant 0 : i32
    return %2, %c0_i32_0 : i32, i32
  }
  func.func @transform_2(%arg0: i32, %arg1: i32) -> (i32, i32) {
    %c0_i32 = arith.constant 0 : i32
    %c0_i32_0 = arith.constant 0 : i32
    return %arg0, %c0_i32 : i32, i32
  }
}

</mosaic_0001>

<llo_original>
// kernel: tpu_custom_call.1
$region0: #{tpu_custom_call.1}
  #allocation0 [shape = 'u32[]', space=smem, size = 0x4, offset = 0x4, fixed_abs, tag = 'smem constant byte address 0x4 - core index']
  #allocation1 [shape = 'u32[72,128]{1,0:T(1,128)}', space=vmem, size = 0x9000, scoped, tag = 'internal scratch']
  %s0 = inlined_call_operand.hbm [shape: f32[16,128], index: 0, kind: input, shape index: {}]
  %s1 = inlined_call_operand.hbm [shape: f32[16,128], index: 1, kind: input, shape index: {}]
  %s2 = inlined_call_operand.hbm [shape: f32[8,128], index: 2, kind: output, shape index: {}]
  %s3 = sld [smem:[#allocation0]]
  $region30: #{tpu_custom_call.1} parent=0
    _
  %s5 = ssub.s32 1, %s3
  %s6 = scalar_select 0, %s5, %s3
  $region1: #{tpu_custom_call.1} parent=0
    #allocation2 [shape = 'u8[8192]{0}', space=vmem, size = 0x2000, scoped, tag = 'input window, operand 0, single buffered']
    #allocation3 [shape = 's32[1]{0}', space=sflag, size = 0x4, scoped, tag = 'scoped memory for tpu_custom_call.1']
    #allocation4 [shape = 's32[1]{0}', space=sflag, size = 0x4, scoped, tag = 'scoped memory for tpu_custom_call.1']
    #allocation5 [shape = 'u8[8192]{0}', space=vmem, size = 0x2000, scoped, tag = 'input window, operand 1, single buffered']
    #allocation6 [shape = 's32[1]{0}', space=sflag, size = 0x4, scoped, tag = 'scoped memory for tpu_custom_call.1']
    #allocation7 [shape = 'u8[4096]{0}', space=vmem, size = 0x1000, scoped, tag = 'output window, operand 0, single buffered']
    %7 = vsyncpa [#allocation3], 0
    %8 = vsyncpa [#allocation6], 0
    %9 = vsyncpa [#allocation4], 0
    // Predicated region
    $region2: #{tpu_custom_call.1} parent=1 // pred_check
      _
    $region3: #{tpu_custom_call.1} parent=1 // pred_check_branch
      %11 = sbr.rel (0) target = $region5
    $region4: #{tpu_custom_call.1} parent=1 // pred_region
      %s12 = sadd.s32 0, 0
      %p13 = scmp.lt.s32.totalorder %s12, 0
      %s14 = scalar_select %p13, %s12, 0
      %s15 = smul.u32 2, %s14
      %17 = vsyncadd [#allocation3], 0
      %s18 = smul.addr %s15, 8
      %s19 = scalar_lea.hbm %s0, %s18
      %s20 = sshll.u32 %s19, 4
      %s21 = int_to_ptr.hbm [resolvable:$true] %s20
      %s22 = sshll.u32 [#allocation2], 4
      %s23 = int_to_ptr.vmem [resolvable:$true] %s22
      %28 = dma.hbm_to_vmem [thread:$0]  %s21, 256, %s23, [#allocation3], 128, 128, 8
    $region5: #{tpu_custom_call.1} parent=1 // pred_fallthru
      _
    // Predicated region
    $region6: #{tpu_custom_call.1} parent=1 // pred_check
      _
    $region7: #{tpu_custom_call.1} parent=1 // pred_check_branch
      %30 = sbr.rel (0) target = $region9
    $region8: #{tpu_custom_call.1} parent=1 // pred_region
      %s31 = sadd.s32 0, 0
      %p32 = scmp.lt.s32.totalorder %s31, 0
      %s33 = scalar_select %p32, %s31, 0
      %s34 = smul.u32 2, %s33
      %36 = vsyncadd [#allocation6], 0
      %s37 = smul.addr %s34, 8
      %s38 = scalar_lea.hbm %s1, %s37
      %s39 = sshll.u32 %s38, 4
      %s40 = int_to_ptr.hbm [resolvable:$true] %s39
      %s41 = sshll.u32 [#allocation5], 4
      %s42 = int_to_ptr.vmem [resolvable:$true] %s41
      %47 = dma.hbm_to_vmem [thread:$0]  %s40, 256, %s42, [#allocation6], 128, 128, 8
    $region9: #{tpu_custom_call.1} parent=1 // pred_fallthru
      _
    // Predicated region
    $region10: #{tpu_custom_call.1} parent=1 // pred_check
      _
    $region11: #{tpu_custom_call.1} parent=1 // pred_check_branch
      %49 = sbr.rel (0) target = $region13
    $region12: #{tpu_custom_call.1} parent=1 // pred_region
      %51 = dma.done [#allocation3], 256
    $region13: #{tpu_custom_call.1} parent=1 // pred_fallthru
      _
    // Predicated region
    $region14: #{tpu_custom_call.1} parent=1 // pred_check
      _
    $region15: #{tpu_custom_call.1} parent=1 // pred_check_branch
      %53 = sbr.rel (0) target = $region17
    $region16: #{tpu_custom_call.1} parent=1 // pred_region
      %55 = dma.done [#allocation6], 256
    $region17: #{tpu_custom_call.1} parent=1 // pred_fallthru
      _
    %s56 = sadd.s32 0, 0
    %p57 = scmp.lt.s32.totalorder %s56, 0
    %s58 = scalar_select %p57, %s56, 0
    %s59 = smul.u32 2, %s58
    %s60 = sadd.s32 0, 0
    %p61 = scmp.lt.s32.totalorder %s60, 0
    %s62 = scalar_select %p61, %s60, 0
    %s63 = smul.u32 2, %s62
    %p64 = scmp.eq.s32.totalorder 0, 0
    // Predicated region
    $region18: #{tpu_custom_call.1} parent=1 // pred_check
      %p65 = pneg %p64
    $region19: #{tpu_custom_call.1} parent=1 // pred_check_branch
      %67 = sbr.rel (%p65) target = $region21
    $region20: #{tpu_custom_call.1} parent=1 // pred_region
      %68 = vst [vmem:[#allocation7] sm:$0xff] 0.0
    $region21: #{tpu_custom_call.1} parent=1 // pred_fallthru
      _
    %v69 = vld [vmem:[#allocation7] sm:$0xff]
    %v70 = vld [vmem:[#allocation2] sm:$0xff]
    %v71 = vld [vmem:[#allocation2 + $0x8] sm:$0xff]
    %v72 = vld [vmem:[#allocation5] sm:$0xff]
    %v73 = vld [vmem:[#allocation5 + $0x8] sm:$0xff]
    %v74 = vsub.f32 %v70, %v72
    %v75 = vsub.f32 %v71, %v73
    %v76 = vmul.f32 %v74, %v74
    %v77 = vmul.f32 %v75, %v75
    %v78 = vadd.f32 %v76, %v77
    %v79 = vadd.f32 %v69, %v78
    %80 = vst [vmem:[#allocation7] sm:$0xff] %v79
    // Predicated region
    $region22: #{tpu_custom_call.1} parent=1 // pred_check
      _
    $region23: #{tpu_custom_call.1} parent=1 // pred_check_branch
      %82 = sbr.rel (0) target = $region25
    $region24: #{tpu_custom_call.1} parent=1 // pred_region
      %84 = vsyncadd [#allocation4], 0
      %s86 = sshll.u32 [#allocation7], 4
      %s87 = int_to_ptr.vmem [resolvable:$true] %s86
      %s88 = sshll.u32 %s2, 4
      %s89 = int_to_ptr.hbm [resolvable:$true] %s88
      %91 = dma.vmem_to_hbm [thread:$0]  %s87, 128, %s89, [#allocation4]
    $region25: #{tpu_custom_call.1} parent=1 // pred_fallthru
      _
    // Predicated region
    $region26: #{tpu_custom_call.1} parent=1 // pred_check
      _
    $region27: #{tpu_custom_call.1} parent=1 // pred_check_branch
      %93 = sbr.rel (0) target = $region29
    $region28: #{tpu_custom_call.1} parent=1 // pred_region
      %95 = dma.done [#allocation4], 128
    $region29: #{tpu_custom_call.1} parent=1 // pred_fallthru
      _
    %96 = vsyncpa [#allocation3], 1
    %97 = vsyncpa [#allocation6], 1
    %98 = vsyncpa [#allocation4], 1

</llo_original>
